<compile_context>
chip_gen: v7x
topology: tpu7x:2x2x1
jax: 0.10.0
libtpu: 0.0.40
codegen_flags: <defaults>
</compile_context>

<pallas_src>
import functools

import jax
import jax.numpy as jnp
import numpy as np
from jax.experimental import pallas as pl
from jax.experimental.pallas import tpu as pltpu


def _silu(x):
    """Exact, numerically stable SiLU: x * sigmoid(x), sigmoid via tanh (EUP)."""
    return x * (0.5 * jnp.tanh(0.5 * x) + 0.5)


def _c1_kernel(x_ref, w1b_ref, b1_ref, w3b_ref, b3_ref, out_ref, *,
               n_layers, rows_per_img, n_batches, n_valid_rows):
    """Whole C1 forward in one grid step on a batch-fused, row-padded slab.

    x_ref  : (R, W*C1) f32          input slab; halo / pad rows are zero
    w1b_ref: (W*C1, W*C2) bf16      block-diagonal 1x1 conv weight
    b1_ref : (1, W*C2) f32          1x1 bias, tiled along W
    w3b_ref: (n, 3, W*C2, W*C2) bf16  per-layer, per-ky band (Toeplitz) weights
    b3_ref : (n, W*C2) f32          per-layer 3x3 bias, tiled along W
    out_ref: (R, W*C2) f32

    R = n_batches * rows_per_img rounded up to a multiple of 8.  Row
    b*rows_per_img is batch b's top halo, row b*rows_per_img + rows_per_img-1
    its bottom halo; rows >= n_valid_rows are alignment padding.
    """
    R = x_ref.shape[0]

    # Interior-row mask (iota + static compare chain; no vector mod needed).
    row = jax.lax.broadcasted_iota(jnp.int32, (R, 1), 0)
    interior = row < n_valid_rows
    for b in range(n_batches):
        top = b * rows_per_img
        interior = jnp.logical_and(interior, row != top)
        interior = jnp.logical_and(interior, row != top + rows_per_img - 1)

    # ---- cv1: 1x1 conv == one lane-dense matmul + bias + SiLU --------------
    x = x_ref[...].astype(jnp.bfloat16)                               # (R, WC1)
    y = jnp.dot(x, w1b_ref[...], preferred_element_type=jnp.float32) + b1_ref[...]
    y = jnp.where(interior, _silu(y), 0.0)        # re-zero halo rows (bias != 0)

    # ---- self.m: n x (3x3 conv pad=1 + bias + SiLU) --------------------------
    # Row-shifted operands come from XLU rolls on in-register activations;
    # halo rows stay zero, so the wrap-around rows contribute nothing.
    cur = y
    for layer in range(n_layers):
        up = pltpu.roll(cur, shift=1, axis=0)         # up[r] = cur[r-1]
        dn = pltpu.roll(cur, shift=R - 1, axis=0)     # dn[r] = cur[r+1] (== -1)
        acc = jnp.dot(up.astype(jnp.bfloat16), w3b_ref[layer, 0],
                      preferred_element_type=jnp.float32)
        acc = acc + jnp.dot(cur.astype(jnp.bfloat16), w3b_ref[layer, 1],
                            preferred_element_type=jnp.float32)
        acc = acc + jnp.dot(dn.astype(jnp.bfloat16), w3b_ref[layer, 2],
                            preferred_element_type=jnp.float32)
        cur = jnp.where(interior, _silu(acc + b3_ref[layer:layer + 1, :]), 0.0)

    # ---- residual: m(y) + y  (lane-dense 128-wide unmasked store) ------------
    out_ref[...] = (cur + y).astype(out_ref.dtype)


# ------------------------- one-time weight expansion --------------------------

def _block_diag_1x1(w1, W):
    """(C1, C2) -> (W*C1, W*C2) block-diagonal weight for the flat (w,c) layout."""
    c1, c2 = w1.shape
    eye = jnp.eye(W, dtype=jnp.float32)
    m = jnp.einsum('io,wv->wivo', w1.astype(jnp.float32), eye)
    return m.reshape(W * c1, W * c2)


def _band_3x3(w3_l, W):
    """(3,3,C2,C2) [ky,kx,ci,co] -> (3, W*C2, W*C2) band (Toeplitz) matrices.

    With rows = zero-row-padded activations in (row, W*C2) layout:
        out[r, :] = sum_ky rows[r - 1 + ky, :] @ band[ky]
    The kx taps and the W-edge zero padding live inside band[ky]: input column
    w feeds output column v = w + 1 - kx.
    """
    c2 = w3_l.shape[-1]
    bands = []
    for ky in range(3):
        B = jnp.zeros((W, c2, W, c2), jnp.float32)
        for kx in range(3):
            shift = jnp.eye(W, k=1 - kx, dtype=jnp.float32)  # [w,v] = [v == w+1-kx]
            B = B + jnp.einsum('io,wv->wivo',
                               w3_l[ky, kx].astype(jnp.float32), shift)
        bands.append(B.reshape(W * c2, W * c2))
    return jnp.stack(bands, 0)


def prepare_kernel_weights(params, W):
    """One-time (model-build-time) expansion of the conv weights into the
    lane-dense block-diagonal / block-Toeplitz matrices the kernel consumes.
    Deliberately OUTSIDE the jitted per-call forward path."""
    w1, b1, w3, b3 = params
    n = w3.shape[0]
    c2 = w1.shape[1]
    w1b = _block_diag_1x1(w1, W).astype(jnp.bfloat16)                  # (WC1, WC2)
    b1t = jnp.tile(b1.reshape(1, c2), (1, W)).astype(jnp.float32)      # (1, WC2)
    w3b = jnp.stack([_band_3x3(w3[l], W) for l in range(n)],
                    0).astype(jnp.bfloat16)                            # (n,3,WC2,WC2)
    b3t = jnp.tile(b3, (1, W)).astype(jnp.float32)                     # (n, WC2)
    return w1b, b1t, w3b, b3t


# --------------------------------- forward ------------------------------------

@functools.partial(jax.jit, static_argnums=(2,))
def c1_forward(x_nchw, kernel_weights, n_layers):
    """C1 forward. x_nchw: (N, C1, H, W) f32; kernel_weights from
    prepare_kernel_weights."""
    w1b, b1t, w3b, b3t = kernel_weights
    N, C1, H, W = x_nchw.shape
    WC1 = W * C1
    WC2 = w3b.shape[-1]
    C2 = WC2 // W

    hp = H + 2                       # rows per image incl. zero halo rows
    R = N * hp                       # batch-fused row count
    R_pad = -(-R // 8) * 8           # round up to a sublane multiple

    # NCHW -> lane-packed (rows, W*C1) slab with zero halo rows per batch.
    # (In a fused pipeline these transposes would be eliminated by keeping the
    # lane-dense layout as the external layout.)
    xw = jnp.transpose(x_nchw, (0, 2, 3, 1)).reshape(N, H, WC1)
    xw = jnp.pad(xw, ((0, 0), (1, 1), (0, 0)))             # zero halo rows
    xw = xw.reshape(R, WC1)
    xw = jnp.pad(xw, ((0, R_pad - R), (0, 0)))             # sublane alignment

    kernel = functools.partial(
        _c1_kernel, n_layers=n_layers, rows_per_img=hp,
        n_batches=N, n_valid_rows=R)

    invariant = pl.Buffered(buffer_count=1)   # grid-invariant: single-buffer
    out = pl.pallas_call(
        kernel,
        out_shape=jax.ShapeDtypeStruct((R_pad, WC2), jnp.float32),
        grid=(1,),
        in_specs=[
            pl.BlockSpec((R_pad, WC1), lambda i: (0, 0)),
            pl.BlockSpec((WC1, WC2), lambda i: (0, 0), pipeline_mode=invariant),
            pl.BlockSpec((1, WC2), lambda i: (0, 0), pipeline_mode=invariant),
            pl.BlockSpec((n_layers, 3, WC2, WC2), lambda i: (0, 0, 0, 0),
                         pipeline_mode=invariant),
            pl.BlockSpec((n_layers, WC2), lambda i: (0, 0),
                         pipeline_mode=invariant),
        ],
        out_specs=pl.BlockSpec((R_pad, WC2), lambda i: (0, 0)),
        compiler_params=pltpu.CompilerParams(
            dimension_semantics=("parallel",),
            vmem_limit_bytes=48 * 1024 * 1024,
        ),
    )(xw, w1b, b1t, w3b, b3t)

    # (rows, W*C2) -> NCHW (drop halo and alignment rows).
    out = out[:R].reshape(N, hp, W, C2)[:, 1:H + 1]
    return jnp.transpose(out, (0, 3, 1, 2))


# ------------------------- parameter construction -----------------------------

def _fold_bn(w_oihw, gamma, beta, mean, var, eps):
    """Fold eval-mode BatchNorm into the preceding bias-free conv (exact)."""
    scale = gamma / jnp.sqrt(var + eps)
    w = w_oihw * scale[:, None, None, None]
    b = beta - mean * scale
    return w, b


def init_params(key, c1, c2, n, eps=1e-3):
    """Deterministic synthetic parameters (PyTorch conv layout, BN-folded),
    rearranged into the layouts the kernel expects; weights stored bf16."""
    ks = jax.random.split(key, 2 + 5 * (n + 1))
    it = iter(ks)

    def bn_params(c):
        gamma = 1.0 + 0.1 * jax.random.normal(next(it), (c,), jnp.float32)
        beta = 0.1 * jax.random.normal(next(it), (c,), jnp.float32)
        mean = 0.1 * jax.random.normal(next(it), (c,), jnp.float32)
        var = 1.0 + 0.1 * jnp.abs(jax.random.normal(next(it), (c,), jnp.float32))
        return gamma, beta, mean, var

    # cv1: Conv2d(c1, c2, 1, 1, bias=False) + BN(c2)
    w_cv1 = 0.2 * jax.random.normal(next(it), (c2, c1, 1, 1), jnp.float32)
    w_cv1, b_cv1 = _fold_bn(w_cv1, *bn_params(c2), eps)
    w1 = jnp.transpose(w_cv1[:, :, 0, 0], (1, 0))          # (c1, c2)
    b1 = b_cv1.reshape(1, c2)

    # m: n x [Conv2d(c2, c2, 3, 1, pad=1, bias=False) + BN(c2)]
    w3_list, b3_list = [], []
    for _ in range(n):
        w = 0.1 * jax.random.normal(next(it), (c2, c2, 3, 3), jnp.float32)
        w, b = _fold_bn(w, *bn_params(c2), eps)
        w3_list.append(jnp.transpose(w, (2, 3, 1, 0)))     # (ky, kx, ci, co)
        b3_list.append(b)
    w3 = jnp.stack(w3_list, 0)                              # (n, 3, 3, c2, c2)
    b3 = jnp.stack(b3_list, 0)                              # (n, c2)

    # bf16 weight storage (MXU operands); biases stay f32.
    return (w1.astype(jnp.bfloat16), b1, w3.astype(jnp.bfloat16), b3)


def ref_forward(x_nchw, params, n_layers):
    """Pure-JAX reference (lax.conv) using the same (bf16-stored) parameters."""
    w1, b1, w3, b3 = params
    c2 = w1.shape[1]
    w1_oihw = jnp.transpose(w1.astype(jnp.float32), (1, 0))[:, :, None, None]
    y = jax.lax.conv_general_dilated(
        x_nchw, w1_oihw, (1, 1), "VALID",
        dimension_numbers=("NCHW", "OIHW", "NCHW"))
    y = jax.nn.silu(y + b1.reshape(1, c2, 1, 1))
    cur = y
    for l in range(n_layers):
        w_oihw = jnp.transpose(w3[l].astype(jnp.float32), (3, 2, 0, 1))
        z = jax.lax.conv_general_dilated(
            cur, w_oihw, (1, 1), ((1, 1), (1, 1)),
            dimension_numbers=("NCHW", "OIHW", "NCHW"))
        cur = jax.nn.silu(z + b3[l].reshape(1, c2, 1, 1))
    return cur + y


if __name__ == "__main__":
    N, C1_IN, C2_OUT, H, W = 2, 4, 8, 16, 16
    N_LAYERS = 2

    key = jax.random.PRNGKey(0)
    kx, kp = jax.random.split(key)
    x = jax.random.normal(kx, (N, C1_IN, H, W), jnp.float32)
    params = init_params(kp, C1_IN, C2_OUT, N_LAYERS)

    # One-time weight expansion (model build time), outside the forward path.
    kweights = prepare_kernel_weights(params, W)

    out = jax.block_until_ready(c1_forward(x, kweights, N_LAYERS))
    ref = jax.block_until_ready(ref_forward(x, params, N_LAYERS))

    # bf16 MXU operands (f32 accumulate) vs. the f32 lax.conv reference;
    # SiLU is exact, so the only mismatch is bf16 activation rounding.
    np.testing.assert_allclose(np.asarray(out), np.asarray(ref),
                               rtol=2e-2, atol=2e-2)
    print("KERNEL_OK")
</pallas_src>

<mosaic_0001>
module attributes {stable_mosaic.version = 11 : i64} {
  func.func @_c1_kernel(%arg0: i32, %arg1: memref<40x64xf32, #tpu.memory_space<vmem>>, %arg2: memref<64x128xbf16, #tpu.memory_space<vmem>>, %arg3: memref<1x128xf32, #tpu.memory_space<vmem>>, %arg4: memref<2x3x128x128xbf16, #tpu.memory_space<vmem>>, %arg5: memref<2x128xf32, #tpu.memory_space<vmem>>, %arg6: memref<40x128xf32, #tpu.memory_space<vmem>>) attributes {dimension_semantics = [#tpu.dimension_semantics<parallel>], iteration_bounds = array<i64: 1>, scalar_prefetch = 0 : i64, scratch_operands = 0 : i64, tpu.core_type = #tpu.core_type<tc>, window_params = [{pipeline_mode = #tpu.pipeline_mode<synchronous>, transform_indices = @transform_0, window_bounds = array<i64: 40, 64>}, {pipeline_mode = #tpu.pipeline_mode<synchronous>, transform_indices = @transform_1, window_bounds = array<i64: 64, 128>}, {pipeline_mode = #tpu.pipeline_mode<synchronous>, transform_indices = @transform_2, window_bounds = array<i64: 1, 128>}, {pipeline_mode = #tpu.pipeline_mode<synchronous>, transform_indices = @transform_3, window_bounds = array<i64: 2, 3, 128, 128>}, {pipeline_mode = #tpu.pipeline_mode<synchronous>, transform_indices = @transform_4, window_bounds = array<i64: 2, 128>}, {pipeline_mode = #tpu.pipeline_mode<synchronous>, transform_indices = @transform_5, window_bounds = array<i64: 40, 128>}]} {
    %0 = tpu.iota {dimensions = array<i32: 0>} : vector<40x1xi32>
    %c36_i32 = arith.constant 36 : i32
    %1 = vector.broadcast %c36_i32 : i32 to vector<40x1xi32>
    %2 = arith.cmpi slt, %0, %1 : vector<40x1xi32>
    %c0_i32 = arith.constant 0 : i32
    %3 = vector.broadcast %c0_i32 : i32 to vector<40x1xi32>
    %4 = arith.cmpi ne, %0, %3 : vector<40x1xi32>
    %5 = arith.andi %2, %4 : vector<40x1xi1>
    %c17_i32 = arith.constant 17 : i32
    %6 = vector.broadcast %c17_i32 : i32 to vector<40x1xi32>
    %7 = arith.cmpi ne, %0, %6 : vector<40x1xi32>
    %8 = arith.andi %5, %7 : vector<40x1xi1>
    %c18_i32 = arith.constant 18 : i32
    %9 = vector.broadcast %c18_i32 : i32 to vector<40x1xi32>
    %10 = arith.cmpi ne, %0, %9 : vector<40x1xi32>
    %11 = arith.andi %8, %10 : vector<40x1xi1>
    %c35_i32 = arith.constant 35 : i32
    %12 = vector.broadcast %c35_i32 : i32 to vector<40x1xi32>
    %13 = arith.cmpi ne, %0, %12 : vector<40x1xi32>
    %14 = arith.andi %11, %13 : vector<40x1xi1>
    %c0 = arith.constant 0 : index
    %c0_0 = arith.constant 0 : index
    %15 = vector.load %arg1[%c0, %c0_0] : memref<40x64xf32, #tpu.memory_space<vmem>>, vector<40x64xf32>
    %16 = arith.truncf %15 : vector<40x64xf32> to vector<40x64xbf16>
    %c0_1 = arith.constant 0 : index
    %c0_2 = arith.constant 0 : index
    %17 = vector.load %arg2[%c0_1, %c0_2] : memref<64x128xbf16, #tpu.memory_space<vmem>>, vector<64x128xbf16>
    %cst = arith.constant dense<0.000000e+00> : vector<40x128xf32>
    %18 = tpu.matmul %16, %17, %cst {dimension_numbers = #tpu.dot_dimension_numbers<[1], [0], [0], [1], [0, 0, 1, 1], [], []>} : vector<40x64xbf16>, vector<64x128xbf16>, vector<40x128xf32> -> vector<40x128xf32>
    %c0_3 = arith.constant 0 : index
    %c0_4 = arith.constant 0 : index
    %19 = vector.load %arg3[%c0_3, %c0_4] : memref<1x128xf32, #tpu.memory_space<vmem>>, vector<1x128xf32>
    %20 = vector.broadcast %19 : vector<1x128xf32> to vector<40x128xf32>
    %21 = arith.addf %18, %20 : vector<40x128xf32>
    %cst_5 = arith.constant 5.000000e-01 : f32
    %22 = vector.broadcast %cst_5 : f32 to vector<40x128xf32>
    %23 = arith.mulf %22, %21 : vector<40x128xf32>
    %24 = math.tanh %23 : vector<40x128xf32>
    %cst_6 = arith.constant 5.000000e-01 : f32
    %25 = vector.broadcast %cst_6 : f32 to vector<40x128xf32>
    %26 = arith.mulf %25, %24 : vector<40x128xf32>
    %cst_7 = arith.constant 5.000000e-01 : f32
    %27 = vector.broadcast %cst_7 : f32 to vector<40x128xf32>
    %28 = arith.addf %26, %27 : vector<40x128xf32>
    %29 = arith.mulf %21, %28 : vector<40x128xf32>
    %cst_8 = arith.constant 0.000000e+00 : f32
    %30 = vector.shape_cast %14 : vector<40x1xi1> to vector<40x1xi1>
    %31 = vector.broadcast %30 : vector<40x1xi1> to vector<40x128xi1>
    %32 = vector.broadcast %cst_8 : f32 to vector<40x128xf32>
    %33 = arith.select %31, %29, %32 : vector<40x128xi1>, vector<40x128xf32>
    %c1_i32 = arith.constant 1 : i32
    %34 = tpu.dynamic_rotate %33 by %c1_i32 dim 0 : vector<40x128xf32>, i32 -> vector<40x128xf32>
    %c39_i32 = arith.constant 39 : i32
    %35 = tpu.dynamic_rotate %33 by %c39_i32 dim 0 : vector<40x128xf32>, i32 -> vector<40x128xf32>
    %36 = arith.truncf %34 : vector<40x128xf32> to vector<40x128xbf16>
    %c0_9 = arith.constant 0 : index
    %c0_10 = arith.constant 0 : index
    %c0_11 = arith.constant 0 : index
    %c0_12 = arith.constant 0 : index
    %37 = vector.load %arg4[%c0_9, %c0_10, %c0_11, %c0_12] : memref<2x3x128x128xbf16, #tpu.memory_space<vmem>>, vector<1x1x128x128xbf16>
    %38 = vector.shape_cast %37 : vector<1x1x128x128xbf16> to vector<128x128xbf16>
    %cst_13 = arith.constant dense<0.000000e+00> : vector<40x128xf32>
    %39 = tpu.matmul %36, %38, %cst_13 {dimension_numbers = #tpu.dot_dimension_numbers<[1], [0], [0], [1], [0, 0, 1, 1], [], []>} : vector<40x128xbf16>, vector<128x128xbf16>, vector<40x128xf32> -> vector<40x128xf32>
    %40 = arith.truncf %33 : vector<40x128xf32> to vector<40x128xbf16>
    %c0_14 = arith.constant 0 : index
    %c1 = arith.constant 1 : index
    %c0_15 = arith.constant 0 : index
    %c0_16 = arith.constant 0 : index
    %41 = vector.load %arg4[%c0_14, %c1, %c0_15, %c0_16] : memref<2x3x128x128xbf16, #tpu.memory_space<vmem>>, vector<1x1x128x128xbf16>
    %42 = vector.shape_cast %41 : vector<1x1x128x128xbf16> to vector<128x128xbf16>
    %cst_17 = arith.constant dense<0.000000e+00> : vector<40x128xf32>
    %43 = tpu.matmul %40, %42, %cst_17 {dimension_numbers = #tpu.dot_dimension_numbers<[1], [0], [0], [1], [0, 0, 1, 1], [], []>} : vector<40x128xbf16>, vector<128x128xbf16>, vector<40x128xf32> -> vector<40x128xf32>
    %44 = arith.addf %39, %43 : vector<40x128xf32>
    %45 = arith.truncf %35 : vector<40x128xf32> to vector<40x128xbf16>
    %c0_18 = arith.constant 0 : index
    %c2 = arith.constant 2 : index
    %c0_19 = arith.constant 0 : index
    %c0_20 = arith.constant 0 : index
    %46 = vector.load %arg4[%c0_18, %c2, %c0_19, %c0_20] : memref<2x3x128x128xbf16, #tpu.memory_space<vmem>>, vector<1x1x128x128xbf16>
    %47 = vector.shape_cast %46 : vector<1x1x128x128xbf16> to vector<128x128xbf16>
    %cst_21 = arith.constant dense<0.000000e+00> : vector<40x128xf32>
    %48 = tpu.matmul %45, %47, %cst_21 {dimension_numbers = #tpu.dot_dimension_numbers<[1], [0], [0], [1], [0, 0, 1, 1], [], []>} : vector<40x128xbf16>, vector<128x128xbf16>, vector<40x128xf32> -> vector<40x128xf32>
    %49 = arith.addf %44, %48 : vector<40x128xf32>
    %c0_22 = arith.constant 0 : index
    %c0_23 = arith.constant 0 : index
    %50 = vector.load %arg5[%c0_22, %c0_23] : memref<2x128xf32, #tpu.memory_space<vmem>>, vector<1x128xf32>
    %51 = vector.broadcast %50 : vector<1x128xf32> to vector<40x128xf32>
    %52 = arith.addf %49, %51 : vector<40x128xf32>
    %cst_24 = arith.constant 5.000000e-01 : f32
    %53 = vector.broadcast %cst_24 : f32 to vector<40x128xf32>
    %54 = arith.mulf %53, %52 : vector<40x128xf32>
    %55 = math.tanh %54 : vector<40x128xf32>
    %cst_25 = arith.constant 5.000000e-01 : f32
    %56 = vector.broadcast %cst_25 : f32 to vector<40x128xf32>
    %57 = arith.mulf %56, %55 : vector<40x128xf32>
    %cst_26 = arith.constant 5.000000e-01 : f32
    %58 = vector.broadcast %cst_26 : f32 to vector<40x128xf32>
    %59 = arith.addf %57, %58 : vector<40x128xf32>
    %60 = arith.mulf %52, %59 : vector<40x128xf32>
    %cst_27 = arith.constant 0.000000e+00 : f32
    %61 = vector.shape_cast %14 : vector<40x1xi1> to vector<40x1xi1>
    %62 = vector.broadcast %61 : vector<40x1xi1> to vector<40x128xi1>
    %63 = vector.broadcast %cst_27 : f32 to vector<40x128xf32>
    %64 = arith.select %62, %60, %63 : vector<40x128xi1>, vector<40x128xf32>
    %c1_i32_28 = arith.constant 1 : i32
    %65 = tpu.dynamic_rotate %64 by %c1_i32_28 dim 0 : vector<40x128xf32>, i32 -> vector<40x128xf32>
    %c39_i32_29 = arith.constant 39 : i32
    %66 = tpu.dynamic_rotate %64 by %c39_i32_29 dim 0 : vector<40x128xf32>, i32 -> vector<40x128xf32>
    %67 = arith.truncf %65 : vector<40x128xf32> to vector<40x128xbf16>
    %c1_30 = arith.constant 1 : index
    %c0_31 = arith.constant 0 : index
    %c0_32 = arith.constant 0 : index
    %c0_33 = arith.constant 0 : index
    %68 = vector.load %arg4[%c1_30, %c0_31, %c0_32, %c0_33] : memref<2x3x128x128xbf16, #tpu.memory_space<vmem>>, vector<1x1x128x128xbf16>
    %69 = vector.shape_cast %68 : vector<1x1x128x128xbf16> to vector<128x128xbf16>
    %cst_34 = arith.constant dense<0.000000e+00> : vector<40x128xf32>
    %70 = tpu.matmul %67, %69, %cst_34 {dimension_numbers = #tpu.dot_dimension_numbers<[1], [0], [0], [1], [0, 0, 1, 1], [], []>} : vector<40x128xbf16>, vector<128x128xbf16>, vector<40x128xf32> -> vector<40x128xf32>
    %71 = arith.truncf %64 : vector<40x128xf32> to vector<40x128xbf16>
    %c1_35 = arith.constant 1 : index
    %c1_36 = arith.constant 1 : index
    %c0_37 = arith.constant 0 : index
    %c0_38 = arith.constant 0 : index
    %72 = vector.load %arg4[%c1_35, %c1_36, %c0_37, %c0_38] : memref<2x3x128x128xbf16, #tpu.memory_space<vmem>>, vector<1x1x128x128xbf16>
    %73 = vector.shape_cast %72 : vector<1x1x128x128xbf16> to vector<128x128xbf16>
    %cst_39 = arith.constant dense<0.000000e+00> : vector<40x128xf32>
    %74 = tpu.matmul %71, %73, %cst_39 {dimension_numbers = #tpu.dot_dimension_numbers<[1], [0], [0], [1], [0, 0, 1, 1], [], []>} : vector<40x128xbf16>, vector<128x128xbf16>, vector<40x128xf32> -> vector<40x128xf32>
    %75 = arith.addf %70, %74 : vector<40x128xf32>
    %76 = arith.truncf %66 : vector<40x128xf32> to vector<40x128xbf16>
    %c1_40 = arith.constant 1 : index
    %c2_41 = arith.constant 2 : index
    %c0_42 = arith.constant 0 : index
    %c0_43 = arith.constant 0 : index
    %77 = vector.load %arg4[%c1_40, %c2_41, %c0_42, %c0_43] : memref<2x3x128x128xbf16, #tpu.memory_space<vmem>>, vector<1x1x128x128xbf16>
    %78 = vector.shape_cast %77 : vector<1x1x128x128xbf16> to vector<128x128xbf16>
    %cst_44 = arith.constant dense<0.000000e+00> : vector<40x128xf32>
    %79 = tpu.matmul %76, %78, %cst_44 {dimension_numbers = #tpu.dot_dimension_numbers<[1], [0], [0], [1], [0, 0, 1, 1], [], []>} : vector<40x128xbf16>, vector<128x128xbf16>, vector<40x128xf32> -> vector<40x128xf32>
    %80 = arith.addf %75, %79 : vector<40x128xf32>
    %c1_45 = arith.constant 1 : index
    %c0_46 = arith.constant 0 : index
    %81 = vector.load %arg5[%c1_45, %c0_46] : memref<2x128xf32, #tpu.memory_space<vmem>>, vector<1x128xf32>
    %82 = vector.broadcast %81 : vector<1x128xf32> to vector<40x128xf32>
    %83 = arith.addf %80, %82 : vector<40x128xf32>
    %cst_47 = arith.constant 5.000000e-01 : f32
    %84 = vector.broadcast %cst_47 : f32 to vector<40x128xf32>
    %85 = arith.mulf %84, %83 : vector<40x128xf32>
    %86 = math.tanh %85 : vector<40x128xf32>
    %cst_48 = arith.constant 5.000000e-01 : f32
    %87 = vector.broadcast %cst_48 : f32 to vector<40x128xf32>
    %88 = arith.mulf %87, %86 : vector<40x128xf32>
    %cst_49 = arith.constant 5.000000e-01 : f32
    %89 = vector.broadcast %cst_49 : f32 to vector<40x128xf32>
    %90 = arith.addf %88, %89 : vector<40x128xf32>
    %91 = arith.mulf %83, %90 : vector<40x128xf32>
    %cst_50 = arith.constant 0.000000e+00 : f32
    %92 = vector.shape_cast %14 : vector<40x1xi1> to vector<40x1xi1>
    %93 = vector.broadcast %92 : vector<40x1xi1> to vector<40x128xi1>
    %94 = vector.broadcast %cst_50 : f32 to vector<40x128xf32>
    %95 = arith.select %93, %91, %94 : vector<40x128xi1>, vector<40x128xf32>
    %96 = arith.addf %95, %33 : vector<40x128xf32>
    %c0_51 = arith.constant 0 : index
    %c0_52 = arith.constant 0 : index
    %97 = vector.load %arg6[%c0_51, %c0_52] : memref<40x128xf32, #tpu.memory_space<vmem>>, vector<40x128xf32>
    tpu.vector_store %arg6[%c0_51, %c0_52], %96 {strides = array<i32>} : memref<40x128xf32, #tpu.memory_space<vmem>>, vector<40x128xf32>,
    return
  }
  func.func @transform_0(%arg0: i32) -> (i32, i32) {
    %c0_i32 = arith.constant 0 : i32
    %c0_i32_0 = arith.constant 0 : i32
    %c0_i32_1 = arith.constant 0 : i32
    return %c0_i32, %c0_i32_0 : i32, i32
  }
  func.func @transform_1(%arg0: i32) -> (i32, i32) {
    %c0_i32 = arith.constant 0 : i32
    %c0_i32_0 = arith.constant 0 : i32
    %c0_i32_1 = arith.constant 0 : i32
    return %c0_i32, %c0_i32_0 : i32, i32
  }
  func.func @transform_2(%arg0: i32) -> (i32, i32) {
    %c0_i32 = arith.constant 0 : i32
    %c0_i32_0 = arith.constant 0 : i32
    %c0_i32_1 = arith.constant 0 : i32
    return %c0_i32, %c0_i32_0 : i32, i32
  }
  func.func @transform_3(%arg0: i32) -> (i32, i32, i32, i32) {
    %c0_i32 = arith.constant 0 : i32
    %c0_i32_0 = arith.constant 0 : i32
    %c0_i32_1 = arith.constant 0 : i32
    %c0_i32_2 = arith.constant 0 : i32
    %c0_i32_3 = arith.constant 0 : i32
    return %c0_i32, %c0_i32_0, %c0_i32_1, %c0_i32_2 : i32, i32, i32, i32
  }
  func.func @transform_4(%arg0: i32) -> (i32, i32) {
    %c0_i32 = arith.constant 0 : i32
    %c0_i32_0 = arith.constant 0 : i32
    %c0_i32_1 = arith.constant 0 : i32
    return %c0_i32, %c0_i32_0 : i32, i32
  }
  func.func @transform_5(%arg0: i32) -> (i32, i32) {
    %c0_i32 = arith.constant 0 : i32
    %c0_i32_0 = arith.constant 0 : i32
    %c0_i32_1 = arith.constant 0 : i32
    return %c0_i32, %c0_i32_0 : i32, i32
  }
}

</mosaic_0001>

<llo_original>
// kernel: c1_forward.1
$region0: #{c1_forward.1}
  #allocation0 [shape = 'u32[]', space=smem, size = 0x4, offset = 0x4, fixed_abs, tag = 'smem constant byte address 0x4 - core index']
  #allocation1 [shape = 'u32[144,128]{1,0:T(1,128)}', space=vmem, size = 0x12000, scoped, tag = 'internal scratch']
  %s0 = inlined_call_operand.vmem [shape: f32[40,64], index: 0, kind: input, shape index: {}]
  %s1 = inlined_call_operand.vmem [shape: bf16[64,128], index: 1, kind: input, shape index: {}]
  %s2 = inlined_call_operand.vmem [shape: f32[1,128], index: 2, kind: input, shape index: {}]
  %s3 = inlined_call_operand.vmem [shape: bf16[2,3,128,128], index: 3, kind: input, shape index: {}]
  %s4 = inlined_call_operand.vmem [shape: f32[2,128], index: 4, kind: input, shape index: {}]
  %s5 = inlined_call_operand.vmem [shape: f32[40,128], index: 5, kind: output, shape index: {}]
  %s6 = sld [smem:[#allocation0]]
  $region30: #{c1_forward.1} parent=0
    _
  %s8 = ssub.s32 1, %s6
  %s9 = scalar_select 0, %s8, %s6
  // Predicated region
  $region2: #{c1_forward.1} parent=0 // pred_check
    _
  $region3: #{c1_forward.1} parent=0 // pred_check_branch
    %11 = sbr.rel (0) target = $region5
  $region4: #{c1_forward.1} parent=0 // pred_region
    _
  $region5: #{c1_forward.1} parent=0 // pred_fallthru
    _
  // Predicated region
  $region6: #{c1_forward.1} parent=0 // pred_check
    _
  $region7: #{c1_forward.1} parent=0 // pred_check_branch
    %13 = sbr.rel (0) target = $region9
  $region8: #{c1_forward.1} parent=0 // pred_region
    _
  $region9: #{c1_forward.1} parent=0 // pred_fallthru
    _
  // Predicated region
  $region10: #{c1_forward.1} parent=0 // pred_check
    _
  $region11: #{c1_forward.1} parent=0 // pred_check_branch
    %15 = sbr.rel (0) target = $region13
  $region12: #{c1_forward.1} parent=0 // pred_region
    _
  $region13: #{c1_forward.1} parent=0 // pred_fallthru
    _
  // Predicated region
  $region14: #{c1_forward.1} parent=0 // pred_check
    _
  $region15: #{c1_forward.1} parent=0 // pred_check_branch
    %17 = sbr.rel (0) target = $region17
  $region16: #{c1_forward.1} parent=0 // pred_region
    _
  $region17: #{c1_forward.1} parent=0 // pred_fallthru
    _
  // Predicated region
  $region18: #{c1_forward.1} parent=0 // pred_check
    _
  $region19: #{c1_forward.1} parent=0 // pred_check_branch
    %19 = sbr.rel (0) target = $region21
  $region20: #{c1_forward.1} parent=0 // pred_region
    _
  $region21: #{c1_forward.1} parent=0 // pred_fallthru
    _
  %v21 = vlaneseq
  %v22 = vshrl.u32 %v21, 7
  %v23 = vadd.s32 %v22, 8
  %v24 = vadd.s32 %v22, 16
  %v25 = vadd.s32 %v22, 24
  %v26 = vadd.s32 %v22, 32
  %vm27 = vcmp.lt.s32.totalorder %v22, 36
  %vm28 = vcmp.lt.s32.totalorder %v23, 36
  %vm29 = vcmp.lt.s32.totalorder %v24, 36
  %vm30 = vcmp.lt.s32.totalorder %v25, 36
  %vm31 = vcmp.lt.s32.totalorder %v26, 36
  %vm32 = vcmp.ne.s32.totalorder %v22, 0
  %vm33 = vcmp.ne.s32.totalorder %v23, 0
  %vm34 = vcmp.ne.s32.totalorder %v24, 0
  %vm35 = vcmp.ne.s32.totalorder %v25, 0
  %vm36 = vcmp.ne.s32.totalorder %v26, 0
  %vm37 = vmand %vm27, %vm32
  %vm38 = vmand %vm28, %vm33
  %vm39 = vmand %vm29, %vm34
  %vm40 = vmand %vm30, %vm35
  %vm41 = vmand %vm31, %vm36
  %vm42 = vcmp.ne.s32.totalorder %v22, 17
  %vm43 = vcmp.ne.s32.totalorder %v23, 17
  %vm44 = vcmp.ne.s32.totalorder %v24, 17
  %vm45 = vcmp.ne.s32.totalorder %v25, 17
  %vm46 = vcmp.ne.s32.totalorder %v26, 17
  %vm47 = vmand %vm37, %vm42
  %vm48 = vmand %vm38, %vm43
  %vm49 = vmand %vm39, %vm44
  %vm50 = vmand %vm40, %vm45
  %vm51 = vmand %vm41, %vm46
  %vm52 = vcmp.ne.s32.totalorder %v22, 18
  %vm53 = vcmp.ne.s32.totalorder %v23, 18
  %vm54 = vcmp.ne.s32.totalorder %v24, 18
  %vm55 = vcmp.ne.s32.totalorder %v25, 18
  %vm56 = vcmp.ne.s32.totalorder %v26, 18
  %vm57 = vmand %vm47, %vm52
  %vm58 = vmand %vm48, %vm53
  %vm59 = vmand %vm49, %vm54
  %vm60 = vmand %vm50, %vm55
  %vm61 = vmand %vm51, %vm56
  %vm62 = vcmp.ne.s32.totalorder %v22, 35
  %vm63 = vcmp.ne.s32.totalorder %v23, 35
  %vm64 = vcmp.ne.s32.totalorder %v24, 35
  %vm65 = vcmp.ne.s32.totalorder %v25, 35
  %vm66 = vcmp.ne.s32.totalorder %v26, 35
  %vm67 = vmand %vm57, %vm62
  %vm68 = vmand %vm58, %vm63
  %vm69 = vmand %vm59, %vm64
  %vm70 = vmand %vm60, %vm65
  %vm71 = vmand %vm61, %vm66
  %v72 = vld [vmem:[%s0] sm:$0xff]
  %v73 = vld [vmem:[%s0 + $0x8] sm:$0xff]
  %v74 = vld [vmem:[%s0 + $0x10] sm:$0xff]
  %v75 = vld [vmem:[%s0 + $0x18] sm:$0xff]
  %v76 = vld [vmem:[%s0 + $0x20] sm:$0xff]
  %v77 = vpack.c.bf16 %v73, %v72
  %v78 = vpack.c.bf16 %v75, %v74
  %v79 = vpack.c.bf16 %v76, %v76
  %v80 = vld [vmem:[%s1] sm:$0xf]
  %v81 = vld [vmem:[%s1 + $0x4] sm:$0xf]
  %v82 = vld [vmem:[%s1 + $0x8] sm:$0xf]
  %v83 = vld [vmem:[%s1 + $0xc] sm:$0xf]
  %v84 = vld [vmem:[%s1 + $0x10] sm:$0xf]
  %v85 = vld [vmem:[%s1 + $0x14] sm:$0xf]
  %v86 = vld [vmem:[%s1 + $0x18] sm:$0xf]
  %v87 = vld [vmem:[%s1 + $0x1c] sm:$0xf]
  %v88 = vld [vmem:[%s2] sm:$0x1]
  %v90 = vlaneseq
  %v91 = vshrl.u32 %v90, 7
  %v92 = vsub.s32 0, %v91
  %v93 = vrot.slane %v88, %v92
  %v103 = vunpack.c.l.b16 %v80
  %v104 = vunpack.c.l.b16 %v81
  %v105 = vunpack.c.l.b16 %v82
  %v106 = vunpack.c.l.b16 %v83
  %v107 = vunpack.c.l.b16 %v84
  %v108 = vunpack.c.l.b16 %v85
  %v109 = vunpack.c.l.b16 %v86
  %v110 = vunpack.c.l.b16 %v87
  %v111 = vpack.c.b16 %v104, %v103
  %v112 = vpack.c.b16 %v106, %v105
  %v113 = vpack.c.b16 %v108, %v107
  %v114 = vpack.c.b16 %v110, %v109
  %vm119 = vcmask 523264
  %v121 = vsel %vm119, %v77, 0
  %v124 = vsel %vm119, %v78, 0
  %v127 = vsel %vm119, %v79, 0
  %129 = vmatprep.subr.bf16.mxu0 0
  %130 = vmatpush1.bf16.msra.mxu0 %v111
  %131 = vmatprep.subr.bf16.mxu0 0
  %132 = vmatpush1.bf16.msra.mxu0 %v112
  %133 = vmatprep.subr.bf16.mxu0 0
  %134 = vmatpush1.bf16.msra.mxu0 %v113
  %135 = vmatprep.subr.bf16.mxu0 0
  %136 = vmatpush1.bf16.msra.mxu0 %v114
  %137 = vmatprep.subr.bf16.mxu0 0
  %138 = vmatpush1.bf16.msra.mxu0 0
  %139 = vmatprep.subr.bf16.mxu0 0
  %140 = vmatpush1.bf16.msra.mxu0 0
  %141 = vmatprep.subr.bf16.mxu0 0
  %142 = vmatpush1.bf16.msra.mxu0 0
  %143 = vmatprep.subr.bf16.mxu0 0
  %144 = vmatpush1.bf16.msra.mxu0 0
  %145 = vmatprep.subr.bf16.mxu0 0
  %146 = vmatpush1.bf16.msra.mxu0 0
  %147 = vmatprep.subr.bf16.mxu0 0
  %148 = vmatpush1.bf16.msra.mxu0 0
  %149 = vmatprep.subr.bf16.mxu0 0
  %150 = vmatpush1.bf16.msra.mxu0 0
  %151 = vmatprep.subr.bf16.mxu0 0
  %152 = vmatpush1.bf16.msra.mxu0 0
  %153 = vmatprep.subr.bf16.mxu0 0
  %154 = vmatpush1.bf16.msra.mxu0 0
  %155 = vmatprep.subr.bf16.mxu0 0
  %156 = vmatpush1.bf16.msra.mxu0 0
  %157 = vmatprep.subr.bf16.mxu0 0
  %158 = vmatpush1.bf16.msra.mxu0 0
  %159 = vmatprep.subr.bf16.mxu0 0
  %160 = vmatpush1.bf16.msra.mxu0 0
  %161 = vmatprep.mubr.bf16.mxu0 0
  %162 = vmatmul.mubr.bf16.gmra.mrb[0].mxu0 %v121
  %v163 = vpop.f32.mrb[0].mxu0
  %v164 = vadd.f32 %v93, %v163
  %v165 = vpop.f32.mrb[0].mxu0
  %v166 = vpop.f32.mrb[0].mxu0
  %v167 = vadd.f32 %v93, %v166
  %v168 = vpop.f32.mrb[0].mxu0
  %169 = vmatprep.mubr.bf16.mxu0 0
  %170 = vmatmul.mubr.bf16.gmra.mrb[0].mxu0 %v124
  %v171 = vpop.f32.mrb[0].mxu0
  %v172 = vadd.f32 %v93, %v171
  %v173 = vpop.f32.mrb[0].mxu0
  %v174 = vpop.f32.mrb[0].mxu0
  %v175 = vadd.f32 %v93, %v174
  %v176 = vpop.f32.mrb[0].mxu0
  %177 = vmatprep.mubr.bf16.mxu0 0
  %178 = vmatmul.mubr.bf16.gmra.mrb[0].mxu0 %v127
  %v179 = vpop.f32.mrb[0].mxu0
  %v180 = vadd.f32 %v93, %v179
  %v181 = vpop.f32.mrb[0].mxu0
  %v182 = vpop.f32.mrb[0].mxu0
  %v183 = vpop.f32.mrb[0].mxu0
  %184 = vdwg.mxu0
  %v185 = vmul.f32 %v164, 0.5
  %v186 = vmul.f32 %v167, 0.5
  %v187 = vmul.f32 %v172, 0.5
  %v188 = vmul.f32 %v175, 0.5
  %v189 = vmul.f32 %v180, 0.5
  %v190 = vtanh.pop %v185
  %v191 = vtanh.pop %v186
  %v192 = vtanh.pop %v187
  %v193 = vtanh.pop %v188
  %v194 = vtanh.pop %v189
  %v195 = vmul.f32 %v190, 0.5
  %v196 = vmul.f32 %v191, 0.5
  %v197 = vmul.f32 %v192, 0.5
  %v198 = vmul.f32 %v193, 0.5
  %v199 = vmul.f32 %v194, 0.5
  %v200 = vadd.f32 %v195, 0.5
  %v201 = vadd.f32 %v196, 0.5
  %v202 = vadd.f32 %v197, 0.5
  %v203 = vadd.f32 %v198, 0.5
  %v204 = vadd.f32 %v199, 0.5
  %v205 = vmul.f32 %v164, %v200
  %v206 = vmul.f32 %v167, %v201
  %v207 = vmul.f32 %v172, %v202
  %v208 = vmul.f32 %v175, %v203
  %v209 = vmul.f32 %v180, %v204
  %v210 = vsel %vm67, 1, 0
  %v211 = vsel %vm68, 1, 0
  %v212 = vsel %vm69, 1, 0
  %v213 = vsel %vm70, 1, 0
  %v214 = vsel %vm71, 1, 0
  %vm215 = vcmp.eq.s32.totalorder %v210, 1
  %vm216 = vcmp.eq.s32.totalorder %v211, 1
  %vm217 = vcmp.eq.s32.totalorder %v212, 1
  %vm218 = vcmp.eq.s32.totalorder %v213, 1
  %vm219 = vcmp.eq.s32.totalorder %v214, 1
  %v220 = vsel %vm215, %v205, 0.0
  %v221 = vsel %vm216, %v206, 0.0
  %v222 = vsel %vm217, %v207, 0.0
  %v223 = vsel %vm218, %v208, 0.0
  %v224 = vsel %vm219, %v209, 0.0
  %v225 = vrot.slane %v220, 7
  %v226 = vrot.slane %v221, 7
  %v227 = vrot.slane %v222, 7
  %v228 = vrot.slane %v223, 7
  %v229 = vrot.slane %v224, 7
  %vm230 = vcmp.lt.s32.totalorder %v22, 1
  %v231 = vsel %vm230, %v228, %v229
  %v232 = vsel %vm230, %v227, %v228
  %v233 = vsel %vm230, %v226, %v227
  %v234 = vsel %vm230, %v225, %v226
  %v235 = vsel %vm230, %v229, %v225
  %v236 = vrot.slane %v220, 1
  %v237 = vrot.slane %v221, 1
  %v238 = vrot.slane %v222, 1
  %v239 = vrot.slane %v223, 1
  %v240 = vrot.slane %v224, 1
  %vm241 = vcmp.lt.s32.totalorder %v22, 7
  %v242 = vsel %vm241, %v239, %v240
  %v243 = vsel %vm241, %v238, %v239
  %v244 = vsel %vm241, %v237, %v238
  %v245 = vsel %vm241, %v236, %v237
  %v246 = vsel %vm241, %v240, %v236
  %v247 = vpack.c.bf16 %v234, %v235
  %v248 = vpack.c.bf16 %v232, %v233
  %v249 = vpack.c.bf16 %v231, %v231
  %v250 = vld [vmem:[%s3] sm:$0xf]
  %v251 = vld [vmem:[%s3 + $0x4] sm:$0xf]
  %v252 = vld [vmem:[%s3 + $0x8] sm:$0xf]
  %v253 = vld [vmem:[%s3 + $0xc] sm:$0xf]
  %v254 = vld [vmem:[%s3 + $0x10] sm:$0xf]
  %v255 = vld [vmem:[%s3 + $0x14] sm:$0xf]
  %v256 = vld [vmem:[%s3 + $0x18] sm:$0xf]
  %v257 = vld [vmem:[%s3 + $0x1c] sm:$0xf]
  %v258 = vld [vmem:[%s3 + $0x20] sm:$0xf]
  %v259 = vld [vmem:[%s3 + $0x24] sm:$0xf]
  %v260 = vld [vmem:[%s3 + $0x28] sm:$0xf]
  %v261 = vld [vmem:[%s3 + $0x2c] sm:$0xf]
  %v262 = vld [vmem:[%s3 + $0x30] sm:$0xf]
  %v263 = vld [vmem:[%s3 + $0x34] sm:$0xf]
  %v264 = vld [vmem:[%s3 + $0x38] sm:$0xf]
  %v265 = vld [vmem:[%s3 + $0x3c] sm:$0xf]
  %v266 = vpack.c.bf16 %v221, %v220
  %v267 = vpack.c.bf16 %v223, %v222
  %v268 = vpack.c.bf16 %v224, %v224
  %s269 = scalar_lea.vmem %s3, 64
  %v270 = vld [vmem:[%s269] sm:$0xf]
  %v271 = vld [vmem:[%s269 + $0x4] sm:$0xf]
  %v272 = vld [vmem:[%s269 + $0x8] sm:$0xf]
  %v273 = vld [vmem:[%s269 + $0xc] sm:$0xf]
  %v274 = vld [vmem:[%s269 + $0x10] sm:$0xf]
  %v275 = vld [vmem:[%s269 + $0x14] sm:$0xf]
  %v276 = vld [vmem:[%s269 + $0x18] sm:$0xf]
  %v277 = vld [vmem:[%s269 + $0x1c] sm:$0xf]
  %v278 = vld [vmem:[%s269 + $0x20] sm:$0xf]
  %v279 = vld [vmem:[%s269 + $0x24] sm:$0xf]
  %v280 = vld [vmem:[%s269 + $0x28] sm:$0xf]
  %v281 = vld [vmem:[%s269 + $0x2c] sm:$0xf]
  %v282 = vld [vmem:[%s269 + $0x30] sm:$0xf]
  %v283 = vld [vmem:[%s269 + $0x34] sm:$0xf]
  %v284 = vld [vmem:[%s269 + $0x38] sm:$0xf]
  %v285 = vld [vmem:[%s269 + $0x3c] sm:$0xf]
  %v302 = vunpack.c.l.b16 %v270
  %v303 = vunpack.c.l.b16 %v271
  %v304 = vunpack.c.l.b16 %v272
  %v305 = vunpack.c.l.b16 %v273
  %v306 = vunpack.c.l.b16 %v274
  %v307 = vunpack.c.l.b16 %v275
  %v308 = vunpack.c.l.b16 %v276
  %v309 = vunpack.c.l.b16 %v277
  %v310 = vunpack.c.l.b16 %v278
  %v311 = vunpack.c.l.b16 %v279
  %v312 = vunpack.c.l.b16 %v280
  %v313 = vunpack.c.l.b16 %v281
  %v314 = vunpack.c.l.b16 %v282
  %v315 = vunpack.c.l.b16 %v283
  %v316 = vunpack.c.l.b16 %v284
  %v317 = vunpack.c.l.b16 %v285
  %v318 = vpack.c.b16 %v303, %v302
  %v319 = vpack.c.b16 %v305, %v304
  %v320 = vpack.c.b16 %v307, %v306
  %v321 = vpack.c.b16 %v309, %v308
  %v322 = vpack.c.b16 %v311, %v310
  %v323 = vpack.c.b16 %v313, %v312
  %v324 = vpack.c.b16 %v315, %v314
  %v325 = vpack.c.b16 %v317, %v316
  %334 = vmatprep.subr.bf16.mxu0 0
  %335 = vmatpush1.bf16.msra.mxu0 %v318
  %336 = vmatprep.subr.bf16.mxu0 0
  %337 = vmatpush1.bf16.msra.mxu0 %v319
  %338 = vmatprep.subr.bf16.mxu0 0
  %339 = vmatpush1.bf16.msra.mxu0 %v320
  %340 = vmatprep.subr.bf16.mxu0 0
  %341 = vmatpush1.bf16.msra.mxu0 %v321
  %342 = vmatprep.subr.bf16.mxu0 0
  %343 = vmatpush1.bf16.msra.mxu0 %v322
  %344 = vmatprep.subr.bf16.mxu0 0
  %345 = vmatpush1.bf16.msra.mxu0 %v323
  %346 = vmatprep.subr.bf16.mxu0 0
  %347 = vmatpush1.bf16.msra.mxu0 %v324
  %348 = vmatprep.subr.bf16.mxu0 0
  %349 = vmatpush1.bf16.msra.mxu0 %v325
  %350 = vmatprep.subr.bf16.mxu0 0
  %351 = vmatpush1.bf16.msra.mxu0 0
  %352 = vmatprep.subr.bf16.mxu0 0
  %353 = vmatpush1.bf16.msra.mxu0 0
  %354 = vmatprep.subr.bf16.mxu0 0
  %355 = vmatpush1.bf16.msra.mxu0 0
  %356 = vmatprep.subr.bf16.mxu0 0
  %357 = vmatpush1.bf16.msra.mxu0 0
  %358 = vmatprep.subr.bf16.mxu0 0
  %359 = vmatpush1.bf16.msra.mxu0 0
  %360 = vmatprep.subr.bf16.mxu0 0
  %361 = vmatpush1.bf16.msra.mxu0 0
  %362 = vmatprep.subr.bf16.mxu0 0
  %363 = vmatpush1.bf16.msra.mxu0 0
  %364 = vmatprep.subr.bf16.mxu0 0
  %365 = vmatpush1.bf16.msra.mxu0 0
  %366 = vmatprep.mubr.bf16.mxu0 0
  %367 = vmatmul.mubr.bf16.gmra.mrb[0].mxu0 %v266
  %v368 = vpop.f32.mrb[0].mxu0
  %v369 = vadd.f32 0.0, %v368
  %v370 = vpop.f32.mrb[0].mxu0
  %v371 = vpop.f32.mrb[0].mxu0
  %v372 = vadd.f32 0.0, %v371
  %v373 = vpop.f32.mrb[0].mxu0
  %374 = vmatprep.mubr.bf16.mxu0 0
  %375 = vmatmul.mubr.bf16.gmra.mrb[0].mxu0 %v267
  %v376 = vpop.f32.mrb[0].mxu0
  %v377 = vadd.f32 0.0, %v376
  %v378 = vpop.f32.mrb[0].mxu0
  %v379 = vpop.f32.mrb[0].mxu0
  %v380 = vadd.f32 0.0, %v379
  %v381 = vpop.f32.mrb[0].mxu0
  %382 = vmatprep.mubr.bf16.mxu0 0
  %383 = vmatmul.mubr.bf16.gmra.mrb[0].mxu0 %v268
  %v384 = vpop.f32.mrb[0].mxu0
  %v385 = vadd.f32 0.0, %v384
  %v386 = vpop.f32.mrb[0].mxu0
  %v387 = vpop.f32.mrb[0].mxu0
  %v388 = vpop.f32.mrb[0].mxu0
  %389 = vdwg.mxu0
  %v406 = vunpack.c.l.b16 %v250
  %v407 = vunpack.c.l.b16 %v251
  %v408 = vunpack.c.l.b16 %v252
  %v409 = vunpack.c.l.b16 %v253
  %v410 = vunpack.c.l.b16 %v254
  %v411 = vunpack.c.l.b16 %v255
  %v412 = vunpack.c.l.b16 %v256
  %v413 = vunpack.c.l.b16 %v257
  %v414 = vunpack.c.l.b16 %v258
  %v415 = vunpack.c.l.b16 %v259
  %v416 = vunpack.c.l.b16 %v260
  %v417 = vunpack.c.l.b16 %v261
  %v418 = vunpack.c.l.b16 %v262
  %v419 = vunpack.c.l.b16 %v263
  %v420 = vunpack.c.l.b16 %v264
  %v421 = vunpack.c.l.b16 %v265
  %v422 = vpack.c.b16 %v407, %v406
  %v423 = vpack.c.b16 %v409, %v408
  %v424 = vpack.c.b16 %v411, %v410
  %v425 = vpack.c.b16 %v413, %v412
  %v426 = vpack.c.b16 %v415, %v414
  %v427 = vpack.c.b16 %v417, %v416
  %v428 = vpack.c.b16 %v419, %v418
  %v429 = vpack.c.b16 %v421, %v420
  %438 = vmatprep.subr.bf16.mxu0 0
  %439 = vmatpush1.bf16.msra.mxu0 %v422
  %440 = vmatprep.subr.bf16.mxu0 0
  %441 = vmatpush1.bf16.msra.mxu0 %v423
  %442 = vmatprep.subr.bf16.mxu0 0
  %443 = vmatpush1.bf16.msra.mxu0 %v424
  %444 = vmatprep.subr.bf16.mxu0 0
  %445 = vmatpush1.bf16.msra.mxu0 %v425
  %446 = vmatprep.subr.bf16.mxu0 0
  %447 = vmatpush1.bf16.msra.mxu0 %v426
  %448 = vmatprep.subr.bf16.mxu0 0
  %449 = vmatpush1.bf16.msra.mxu0 %v427
  %450 = vmatprep.subr.bf16.mxu0 0
  %451 = vmatpush1.bf16.msra.mxu0 %v428
  %452 = vmatprep.subr.bf16.mxu0 0
  %453 = vmatpush1.bf16.msra.mxu0 %v429
  %454 = vmatprep.subr.bf16.mxu0 0
  %455 = vmatpush1.bf16.msra.mxu0 0
  %456 = vmatprep.subr.bf16.mxu0 0
  %457 = vmatpush1.bf16.msra.mxu0 0
  %458 = vmatprep.subr.bf16.mxu0 0
  %459 = vmatpush1.bf16.msra.mxu0 0
  %460 = vmatprep.subr.bf16.mxu0 0
  %461 = vmatpush1.bf16.msra.mxu0 0
  %462 = vmatprep.subr.bf16.mxu0 0
  %463 = vmatpush1.bf16.msra.mxu0 0
  %464 = vmatprep.subr.bf16.mxu0 0
  %465 = vmatpush1.bf16.msra.mxu0 0
  %466 = vmatprep.subr.bf16.mxu0 0
  %467 = vmatpush1.bf16.msra.mxu0 0
  %468 = vmatprep.subr.bf16.mxu0 0
  %469 = vmatpush1.bf16.msra.mxu0 0
  %470 = vmatprep.mubr.bf16.mxu0 0
  %471 = vmatmul.mubr.bf16.gmra.mrb[0].mxu0 %v247
  %v472 = vpop.f32.mrb[0].mxu0
  %v473 = vadd.f32 %v369, %v472
  %v474 = vpop.f32.mrb[0].mxu0
  %v475 = vpop.f32.mrb[0].mxu0
  %v476 = vadd.f32 %v372, %v475
  %v477 = vpop.f32.mrb[0].mxu0
  %478 = vmatprep.mubr.bf16.mxu0 0
  %479 = vmatmul.mubr.bf16.gmra.mrb[0].mxu0 %v248
  %v480 = vpop.f32.mrb[0].mxu0
  %v481 = vadd.f32 %v377, %v480
  %v482 = vpop.f32.mrb[0].mxu0
  %v483 = vpop.f32.mrb[0].mxu0
  %v484 = vadd.f32 %v380, %v483
  %v485 = vpop.f32.mrb[0].mxu0
  %486 = vmatprep.mubr.bf16.mxu0 0
  %487 = vmatmul.mubr.bf16.gmra.mrb[0].mxu0 %v249
  %v488 = vpop.f32.mrb[0].mxu0
  %v489 = vadd.f32 %v385, %v488
  %v490 = vpop.f32.mrb[0].mxu0
  %v491 = vpop.f32.mrb[0].mxu0
  %v492 = vpop.f32.mrb[0].mxu0
  %493 = vdwg.mxu0
  %v494 = vpack.c.bf16 %v244, %v245
  %v495 = vpack.c.bf16 %v242, %v243
  %v496 = vpack.c.bf16 %v246, %v246
  %s497 = scalar_lea.vmem %s3, 128
  %v498 = vld [vmem:[%s497] sm:$0xf]
  %v499 = vld [vmem:[%s497 + $0x4] sm:$0xf]
  %v500 = vld [vmem:[%s497 + $0x8] sm:$0xf]
  %v501 = vld [vmem:[%s497 + $0xc] sm:$0xf]
  %v502 = vld [vmem:[%s497 + $0x10] sm:$0xf]
  %v503 = vld [vmem:[%s497 + $0x14] sm:$0xf]
  %v504 = vld [vmem:[%s497 + $0x18] sm:$0xf]
  %v505 = vld [vmem:[%s497 + $0x1c] sm:$0xf]
  %v506 = vld [vmem:[%s497 + $0x20] sm:$0xf]
  %v507 = vld [vmem:[%s497 + $0x24] sm:$0xf]
  %v508 = vld [vmem:[%s497 + $0x28] sm:$0xf]
  %v509 = vld [vmem:[%s497 + $0x2c] sm:$0xf]
  %v510 = vld [vmem:[%s497 + $0x30] sm:$0xf]
  %v511 = vld [vmem:[%s497 + $0x34] sm:$0xf]
  %v512 = vld [vmem:[%s497 + $0x38] sm:$0xf]
  %v513 = vld [vmem:[%s497 + $0x3c] sm:$0xf]
  %v530 = vunpack.c.l.b16 %v498
  %v531 = vunpack.c.l.b16 %v499
  %v532 = vunpack.c.l.b16 %v500
  %v533 = vunpack.c.l.b16 %v501
  %v534 = vunpack.c.l.b16 %v502
  %v535 = vunpack.c.l.b16 %v503
  %v536 = vunpack.c.l.b16 %v504
  %v537 = vunpack.c.l.b16 %v505
  %v538 = vunpack.c.l.b16 %v506
  %v539 = vunpack.c.l.b16 %v507
  %v540 = vunpack.c.l.b16 %v508
  %v541 = vunpack.c.l.b16 %v509
  %v542 = vunpack.c.l.b16 %v510
  %v543 = vunpack.c.l.b16 %v511
  %v544 = vunpack.c.l.b16 %v512
  %v545 = vunpack.c.l.b16 %v513
  %v546 = vpack.c.b16 %v531, %v530
  %v547 = vpack.c.b16 %v533, %v532
  %v548 = vpack.c.b16 %v535, %v534
  %v549 = vpack.c.b16 %v537, %v536
  %v550 = vpack.c.b16 %v539, %v538
  %v551 = vpack.c.b16 %v541, %v540
  %v552 = vpack.c.b16 %v543, %v542
  %v553 = vpack.c.b16 %v545, %v544
  %562 = vmatprep.subr.bf16.mxu0 0
  %563 = vmatpush1.bf16.msra.mxu0 %v546
  %564 = vmatprep.subr.bf16.mxu0 0
  %565 = vmatpush1.bf16.msra.mxu0 %v547
  %566 = vmatprep.subr.bf16.mxu0 0
  %567 = vmatpush1.bf16.msra.mxu0 %v548
  %568 = vmatprep.subr.bf16.mxu0 0
  %569 = vmatpush1.bf16.msra.mxu0 %v549
  %570 = vmatprep.subr.bf16.mxu0 0
  %571 = vmatpush1.bf16.msra.mxu0 %v550
  %572 = vmatprep.subr.bf16.mxu0 0
  %573 = vmatpush1.bf16.msra.mxu0 %v551
  %574 = vmatprep.subr.bf16.mxu0 0
  %575 = vmatpush1.bf16.msra.mxu0 %v552
  %576 = vmatprep.subr.bf16.mxu0 0
  %577 = vmatpush1.bf16.msra.mxu0 %v553
  %578 = vmatprep.subr.bf16.mxu0 0
  %579 = vmatpush1.bf16.msra.mxu0 0
  %580 = vmatprep.subr.bf16.mxu0 0
  %581 = vmatpush1.bf16.msra.mxu0 0
  %582 = vmatprep.subr.bf16.mxu0 0
  %583 = vmatpush1.bf16.msra.mxu0 0
  %584 = vmatprep.subr.bf16.mxu0 0
  %585 = vmatpush1.bf16.msra.mxu0 0
  %586 = vmatprep.subr.bf16.mxu0 0
  %587 = vmatpush1.bf16.msra.mxu0 0
  %588 = vmatprep.subr.bf16.mxu0 0
  %589 = vmatpush1.bf16.msra.mxu0 0
  %590 = vmatprep.subr.bf16.mxu0 0
  %591 = vmatpush1.bf16.msra.mxu0 0
  %592 = vmatprep.subr.bf16.mxu0 0
  %593 = vmatpush1.bf16.msra.mxu0 0
  %594 = vmatprep.mubr.bf16.mxu0 0
  %595 = vmatmul.mubr.bf16.gmra.mrb[0].mxu0 %v494
  %v596 = vpop.f32.mrb[0].mxu0
  %v597 = vadd.f32 0.0, %v596
  %v598 = vpop.f32.mrb[0].mxu0
  %v599 = vpop.f32.mrb[0].mxu0
  %v600 = vadd.f32 0.0, %v599
  %v601 = vpop.f32.mrb[0].mxu0
  %602 = vmatprep.mubr.bf16.mxu0 0
  %603 = vmatmul.mubr.bf16.gmra.mrb[0].mxu0 %v495
  %v604 = vpop.f32.mrb[0].mxu0
  %v605 = vadd.f32 0.0, %v604
  %v606 = vpop.f32.mrb[0].mxu0
  %v607 = vpop.f32.mrb[0].mxu0
  %v608 = vadd.f32 0.0, %v607
  %v609 = vpop.f32.mrb[0].mxu0
  %610 = vmatprep.mubr.bf16.mxu0 0
  %611 = vmatmul.mubr.bf16.gmra.mrb[0].mxu0 %v496
  %v612 = vpop.f32.mrb[0].mxu0
  %v613 = vadd.f32 0.0, %v612
  %v614 = vpop.f32.mrb[0].mxu0
  %v615 = vpop.f32.mrb[0].mxu0
  %v616 = vpop.f32.mrb[0].mxu0
  %617 = vdwg.mxu0
  %v618 = vadd.f32 %v473, %v597
  %v619 = vadd.f32 %v476, %v600
  %v620 = vadd.f32 %v481, %v605
  %v621 = vadd.f32 %v484, %v608
  %v622 = vadd.f32 %v489, %v613
  %v623 = vld [vmem:[%s4] sm:$0x1]
  %v624 = vlaneseq
  %v625 = vshrl.u32 %v624, 7
  %v626 = vsub.s32 0, %v625
  %v627 = vrot.slane %v623, %v626
  %v628 = vadd.f32 %v618, %v627
  %v629 = vadd.f32 %v619, %v627
  %v630 = vadd.f32 %v620, %v627
  %v631 = vadd.f32 %v621, %v627
  %v632 = vadd.f32 %v622, %v627
  %v633 = vmul.f32 %v628, 0.5
  %v634 = vmul.f32 %v629, 0.5
  %v635 = vmul.f32 %v630, 0.5
  %v636 = vmul.f32 %v631, 0.5
  %v637 = vmul.f32 %v632, 0.5
  %v638 = vtanh.pop %v633
  %v639 = vtanh.pop %v634
  %v640 = vtanh.pop %v635
  %v641 = vtanh.pop %v636
  %v642 = vtanh.pop %v637
  %v643 = vmul.f32 %v638, 0.5
  %v644 = vmul.f32 %v639, 0.5
  %v645 = vmul.f32 %v640, 0.5
  %v646 = vmul.f32 %v641, 0.5
  %v647 = vmul.f32 %v642, 0.5
  %v648 = vadd.f32 %v643, 0.5
  %v649 = vadd.f32 %v644, 0.5
  %v650 = vadd.f32 %v645, 0.5
  %v651 = vadd.f32 %v646, 0.5
  %v652 = vadd.f32 %v647, 0.5
  %v653 = vmul.f32 %v628, %v648
  %v654 = vmul.f32 %v629, %v649
  %v655 = vmul.f32 %v630, %v650
  %v656 = vmul.f32 %v631, %v651
  %v657 = vmul.f32 %v632, %v652
  %v658 = vsel %vm215, %v653, 0.0
  %v659 = vsel %vm216, %v654, 0.0
  %v660 = vsel %vm217, %v655, 0.0
  %v661 = vsel %vm218, %v656, 0.0
  %v662 = vsel %vm219, %v657, 0.0
  %v663 = vrot.slane %v658, 7
  %v664 = vrot.slane %v659, 7
  %v665 = vrot.slane %v660, 7
  %v666 = vrot.slane %v661, 7
  %v667 = vrot.slane %v662, 7
  %v668 = vsel %vm230, %v666, %v667
  %v669 = vsel %vm230, %v665, %v666
  %v670 = vsel %vm230, %v664, %v665
  %v671 = vsel %vm230, %v663, %v664
  %v672 = vsel %vm230, %v667, %v663
  %v673 = vrot.slane %v658, 1
  %v674 = vrot.slane %v659, 1
  %v675 = vrot.slane %v660, 1
  %v676 = vrot.slane %v661, 1
  %v677 = vrot.slane %v662, 1
  %v678 = vsel %vm241, %v676, %v677
  %v679 = vsel %vm241, %v675, %v676
  %v680 = vsel %vm241, %v674, %v675
  %v681 = vsel %vm241, %v673, %v674
  %v682 = vsel %vm241, %v677, %v673
  %v683 = vpack.c.bf16 %v671, %v672
  %v684 = vpack.c.bf16 %v669, %v670
  %v685 = vpack.c.bf16 %v668, %v668
  %s686 = scalar_lea.vmem %s3, 192
  %v687 = vld [vmem:[%s686] sm:$0xf]
  %v688 = vld [vmem:[%s686 + $0x4] sm:$0xf]
  %v689 = vld [vmem:[%s686 + $0x8] sm:$0xf]
  %v690 = vld [vmem:[%s686 + $0xc] sm:$0xf]
  %v691 = vld [vmem:[%s686 + $0x10] sm:$0xf]
  %v692 = vld [vmem:[%s686 + $0x14] sm:$0xf]
  %v693 = vld [vmem:[%s686 + $0x18] sm:$0xf]
  %v694 = vld [vmem:[%s686 + $0x1c] sm:$0xf]
  %v695 = vld [vmem:[%s686 + $0x20] sm:$0xf]
  %v696 = vld [vmem:[%s686 + $0x24] sm:$0xf]
  %v697 = vld [vmem:[%s686 + $0x28] sm:$0xf]
  %v698 = vld [vmem:[%s686 + $0x2c] sm:$0xf]
  %v699 = vld [vmem:[%s686 + $0x30] sm:$0xf]
  %v700 = vld [vmem:[%s686 + $0x34] sm:$0xf]
  %v701 = vld [vmem:[%s686 + $0x38] sm:$0xf]
  %v702 = vld [vmem:[%s686 + $0x3c] sm:$0xf]
  %v703 = vpack.c.bf16 %v659, %v658
  %v704 = vpack.c.bf16 %v661, %v660
  %v705 = vpack.c.bf16 %v662, %v662
  %s706 = scalar_lea.vmem %s3, 256
  %v707 = vld [vmem:[%s706] sm:$0xf]
  %v708 = vld [vmem:[%s706 + $0x4] sm:$0xf]
  %v709 = vld [vmem:[%s706 + $0x8] sm:$0xf]
  %v710 = vld [vmem:[%s706 + $0xc] sm:$0xf]
  %v711 = vld [vmem:[%s706 + $0x10] sm:$0xf]
  %v712 = vld [vmem:[%s706 + $0x14] sm:$0xf]
  %v713 = vld [vmem:[%s706 + $0x18] sm:$0xf]
  %v714 = vld [vmem:[%s706 + $0x1c] sm:$0xf]
  %v715 = vld [vmem:[%s706 + $0x20] sm:$0xf]
  %v716 = vld [vmem:[%s706 + $0x24] sm:$0xf]
  %v717 = vld [vmem:[%s706 + $0x28] sm:$0xf]
  %v718 = vld [vmem:[%s706 + $0x2c] sm:$0xf]
  %v719 = vld [vmem:[%s706 + $0x30] sm:$0xf]
  %v720 = vld [vmem:[%s706 + $0x34] sm:$0xf]
  %v721 = vld [vmem:[%s706 + $0x38] sm:$0xf]
  %v722 = vld [vmem:[%s706 + $0x3c] sm:$0xf]
  %v739 = vunpack.c.l.b16 %v707
  %v740 = vunpack.c.l.b16 %v708
  %v741 = vunpack.c.l.b16 %v709
  %v742 = vunpack.c.l.b16 %v710
  %v743 = vunpack.c.l.b16 %v711
  %v744 = vunpack.c.l.b16 %v712
  %v745 = vunpack.c.l.b16 %v713
  %v746 = vunpack.c.l.b16 %v714
  %v747 = vunpack.c.l.b16 %v715
  %v748 = vunpack.c.l.b16 %v716
  %v749 = vunpack.c.l.b16 %v717
  %v750 = vunpack.c.l.b16 %v718
  %v751 = vunpack.c.l.b16 %v719
  %v752 = vunpack.c.l.b16 %v720
  %v753 = vunpack.c.l.b16 %v721
  %v754 = vunpack.c.l.b16 %v722
  %v755 = vpack.c.b16 %v740, %v739
  %v756 = vpack.c.b16 %v742, %v741
  %v757 = vpack.c.b16 %v744, %v743
  %v758 = vpack.c.b16 %v746, %v745
  %v759 = vpack.c.b16 %v748, %v747
  %v760 = vpack.c.b16 %v750, %v749
  %v761 = vpack.c.b16 %v752, %v751
  %v762 = vpack.c.b16 %v754, %v753
  %771 = vmatprep.subr.bf16.mxu0 0
  %772 = vmatpush1.bf16.msra.mxu0 %v755
  %773 = vmatprep.subr.bf16.mxu0 0
  %774 = vmatpush1.bf16.msra.mxu0 %v756
  %775 = vmatprep.subr.bf16.mxu0 0
  %776 = vmatpush1.bf16.msra.mxu0 %v757
  %777 = vmatprep.subr.bf16.mxu0 0
  %778 = vmatpush1.bf16.msra.mxu0 %v758
  %779 = vmatprep.subr.bf16.mxu0 0
  %780 = vmatpush1.bf16.msra.mxu0 %v759
  %781 = vmatprep.subr.bf16.mxu0 0
  %782 = vmatpush1.bf16.msra.mxu0 %v760
  %783 = vmatprep.subr.bf16.mxu0 0
  %784 = vmatpush1.bf16.msra.mxu0 %v761
  %785 = vmatprep.subr.bf16.mxu0 0
  %786 = vmatpush1.bf16.msra.mxu0 %v762
  %787 = vmatprep.subr.bf16.mxu0 0
  %788 = vmatpush1.bf16.msra.mxu0 0
  %789 = vmatprep.subr.bf16.mxu0 0
  %790 = vmatpush1.bf16.msra.mxu0 0
  %791 = vmatprep.subr.bf16.mxu0 0
  %792 = vmatpush1.bf16.msra.mxu0 0
  %793 = vmatprep.subr.bf16.mxu0 0
  %794 = vmatpush1.bf16.msra.mxu0 0
  %795 = vmatprep.subr.bf16.mxu0 0
  %796 = vmatpush1.bf16.msra.mxu0 0
  %797 = vmatprep.subr.bf16.mxu0 0
  %798 = vmatpush1.bf16.msra.mxu0 0
  %799 = vmatprep.subr.bf16.mxu0 0
  %800 = vmatpush1.bf16.msra.mxu0 0
  %801 = vmatprep.subr.bf16.mxu0 0
  %802 = vmatpush1.bf16.msra.mxu0 0
  %803 = vmatprep.mubr.bf16.mxu0 0
  %804 = vmatmul.mubr.bf16.gmra.mrb[0].mxu0 %v703
  %v805 = vpop.f32.mrb[0].mxu0
  %v806 = vadd.f32 0.0, %v805
  %v807 = vpop.f32.mrb[0].mxu0
  %v808 = vpop.f32.mrb[0].mxu0
  %v809 = vadd.f32 0.0, %v808
  %v810 = vpop.f32.mrb[0].mxu0
  %811 = vmatprep.mubr.bf16.mxu0 0
  %812 = vmatmul.mubr.bf16.gmra.mrb[0].mxu0 %v704
  %v813 = vpop.f32.mrb[0].mxu0
  %v814 = vadd.f32 0.0, %v813
  %v815 = vpop.f32.mrb[0].mxu0
  %v816 = vpop.f32.mrb[0].mxu0
  %v817 = vadd.f32 0.0, %v816
  %v818 = vpop.f32.mrb[0].mxu0
  %819 = vmatprep.mubr.bf16.mxu0 0
  %820 = vmatmul.mubr.bf16.gmra.mrb[0].mxu0 %v705
  %v821 = vpop.f32.mrb[0].mxu0
  %v822 = vadd.f32 0.0, %v821
  %v823 = vpop.f32.mrb[0].mxu0
  %v824 = vpop.f32.mrb[0].mxu0
  %v825 = vpop.f32.mrb[0].mxu0
  %826 = vdwg.mxu0
  %v843 = vunpack.c.l.b16 %v687
  %v844 = vunpack.c.l.b16 %v688
  %v845 = vunpack.c.l.b16 %v689
  %v846 = vunpack.c.l.b16 %v690
  %v847 = vunpack.c.l.b16 %v691
  %v848 = vunpack.c.l.b16 %v692
  %v849 = vunpack.c.l.b16 %v693
  %v850 = vunpack.c.l.b16 %v694
  %v851 = vunpack.c.l.b16 %v695
  %v852 = vunpack.c.l.b16 %v696
  %v853 = vunpack.c.l.b16 %v697
  %v854 = vunpack.c.l.b16 %v698
  %v855 = vunpack.c.l.b16 %v699
  %v856 = vunpack.c.l.b16 %v700
  %v857 = vunpack.c.l.b16 %v701
  %v858 = vunpack.c.l.b16 %v702
  %v859 = vpack.c.b16 %v844, %v843
  %v860 = vpack.c.b16 %v846, %v845
  %v861 = vpack.c.b16 %v848, %v847
  %v862 = vpack.c.b16 %v850, %v849
  %v863 = vpack.c.b16 %v852, %v851
  %v864 = vpack.c.b16 %v854, %v853
  %v865 = vpack.c.b16 %v856, %v855
  %v866 = vpack.c.b16 %v858, %v857
  %875 = vmatprep.subr.bf16.mxu0 0
  %876 = vmatpush1.bf16.msra.mxu0 %v859
  %877 = vmatprep.subr.bf16.mxu0 0
  %878 = vmatpush1.bf16.msra.mxu0 %v860
  %879 = vmatprep.subr.bf16.mxu0 0
  %880 = vmatpush1.bf16.msra.mxu0 %v861
  %881 = vmatprep.subr.bf16.mxu0 0
  %882 = vmatpush1.bf16.msra.mxu0 %v862
  %883 = vmatprep.subr.bf16.mxu0 0
  %884 = vmatpush1.bf16.msra.mxu0 %v863
  %885 = vmatprep.subr.bf16.mxu0 0
  %886 = vmatpush1.bf16.msra.mxu0 %v864
  %887 = vmatprep.subr.bf16.mxu0 0
  %888 = vmatpush1.bf16.msra.mxu0 %v865
  %889 = vmatprep.subr.bf16.mxu0 0
  %890 = vmatpush1.bf16.msra.mxu0 %v866
  %891 = vmatprep.subr.bf16.mxu0 0
  %892 = vmatpush1.bf16.msra.mxu0 0
  %893 = vmatprep.subr.bf16.mxu0 0
  %894 = vmatpush1.bf16.msra.mxu0 0
  %895 = vmatprep.subr.bf16.mxu0 0
  %896 = vmatpush1.bf16.msra.mxu0 0
  %897 = vmatprep.subr.bf16.mxu0 0
  %898 = vmatpush1.bf16.msra.mxu0 0
  %899 = vmatprep.subr.bf16.mxu0 0
  %900 = vmatpush1.bf16.msra.mxu0 0
  %901 = vmatprep.subr.bf16.mxu0 0
  %902 = vmatpush1.bf16.msra.mxu0 0
  %903 = vmatprep.subr.bf16.mxu0 0
  %904 = vmatpush1.bf16.msra.mxu0 0
  %905 = vmatprep.subr.bf16.mxu0 0
  %906 = vmatpush1.bf16.msra.mxu0 0
  %907 = vmatprep.mubr.bf16.mxu0 0
  %908 = vmatmul.mubr.bf16.gmra.mrb[0].mxu0 %v683
  %v909 = vpop.f32.mrb[0].mxu0
  %v910 = vadd.f32 %v806, %v909
  %v911 = vpop.f32.mrb[0].mxu0
  %v912 = vpop.f32.mrb[0].mxu0
  %v913 = vadd.f32 %v809, %v912
  %v914 = vpop.f32.mrb[0].mxu0
  %915 = vmatprep.mubr.bf16.mxu0 0
  %916 = vmatmul.mubr.bf16.gmra.mrb[0].mxu0 %v684
  %v917 = vpop.f32.mrb[0].mxu0
  %v918 = vadd.f32 %v814, %v917
  %v919 = vpop.f32.mrb[0].mxu0
  %v920 = vpop.f32.mrb[0].mxu0
  %v921 = vadd.f32 %v817, %v920
  %v922 = vpop.f32.mrb[0].mxu0
  %923 = vmatprep.mubr.bf16.mxu0 0
  %924 = vmatmul.mubr.bf16.gmra.mrb[0].mxu0 %v685
  %v925 = vpop.f32.mrb[0].mxu0
  %v926 = vadd.f32 %v822, %v925
  %v927 = vpop.f32.mrb[0].mxu0
  %v928 = vpop.f32.mrb[0].mxu0
  %v929 = vpop.f32.mrb[0].mxu0
  %930 = vdwg.mxu0
  %v931 = vpack.c.bf16 %v680, %v681
  %v932 = vpack.c.bf16 %v678, %v679
  %v933 = vpack.c.bf16 %v682, %v682
  %s934 = scalar_lea.vmem %s3, 320
  %v935 = vld [vmem:[%s934] sm:$0xf]
  %v936 = vld [vmem:[%s934 + $0x4] sm:$0xf]
  %v937 = vld [vmem:[%s934 + $0x8] sm:$0xf]
  %v938 = vld [vmem:[%s934 + $0xc] sm:$0xf]
  %v939 = vld [vmem:[%s934 + $0x10] sm:$0xf]
  %v940 = vld [vmem:[%s934 + $0x14] sm:$0xf]
  %v941 = vld [vmem:[%s934 + $0x18] sm:$0xf]
  %v942 = vld [vmem:[%s934 + $0x1c] sm:$0xf]
  %v943 = vld [vmem:[%s934 + $0x20] sm:$0xf]
  %v944 = vld [vmem:[%s934 + $0x24] sm:$0xf]
  %v945 = vld [vmem:[%s934 + $0x28] sm:$0xf]
  %v946 = vld [vmem:[%s934 + $0x2c] sm:$0xf]
  %v947 = vld [vmem:[%s934 + $0x30] sm:$0xf]
  %v948 = vld [vmem:[%s934 + $0x34] sm:$0xf]
  %v949 = vld [vmem:[%s934 + $0x38] sm:$0xf]
  %v950 = vld [vmem:[%s934 + $0x3c] sm:$0xf]
  %v967 = vunpack.c.l.b16 %v935
  %v968 = vunpack.c.l.b16 %v936
  %v969 = vunpack.c.l.b16 %v937
  %v970 = vunpack.c.l.b16 %v938
  %v971 = vunpack.c.l.b16 %v939
  %v972 = vunpack.c.l.b16 %v940
  %v973 = vunpack.c.l.b16 %v941
  %v974 = vunpack.c.l.b16 %v942
  %v975 = vunpack.c.l.b16 %v943
  %v976 = vunpack.c.l.b16 %v944
  %v977 = vunpack.c.l.b16 %v945
  %v978 = vunpack.c.l.b16 %v946
  %v979 = vunpack.c.l.b16 %v947
  %v980 = vunpack.c.l.b16 %v948
  %v981 = vunpack.c.l.b16 %v949
  %v982 = vunpack.c.l.b16 %v950
  %v983 = vpack.c.b16 %v968, %v967
  %v984 = vpack.c.b16 %v970, %v969
  %v985 = vpack.c.b16 %v972, %v971
  %v986 = vpack.c.b16 %v974, %v973
  %v987 = vpack.c.b16 %v976, %v975
  %v988 = vpack.c.b16 %v978, %v977
  %v989 = vpack.c.b16 %v980, %v979
  %v990 = vpack.c.b16 %v982, %v981
  %999 = vmatprep.subr.bf16.mxu0 0
  %1000 = vmatpush1.bf16.msra.mxu0 %v983
  %1001 = vmatprep.subr.bf16.mxu0 0
  %1002 = vmatpush1.bf16.msra.mxu0 %v984
  %1003 = vmatprep.subr.bf16.mxu0 0
  %1004 = vmatpush1.bf16.msra.mxu0 %v985
  %1005 = vmatprep.subr.bf16.mxu0 0
  %1006 = vmatpush1.bf16.msra.mxu0 %v986
  %1007 = vmatprep.subr.bf16.mxu0 0
  %1008 = vmatpush1.bf16.msra.mxu0 %v987
  %1009 = vmatprep.subr.bf16.mxu0 0
  %1010 = vmatpush1.bf16.msra.mxu0 %v988
  %1011 = vmatprep.subr.bf16.mxu0 0
  %1012 = vmatpush1.bf16.msra.mxu0 %v989
  %1013 = vmatprep.subr.bf16.mxu0 0
  %1014 = vmatpush1.bf16.msra.mxu0 %v990
  %1015 = vmatprep.subr.bf16.mxu0 0
  %1016 = vmatpush1.bf16.msra.mxu0 0
  %1017 = vmatprep.subr.bf16.mxu0 0
  %1018 = vmatpush1.bf16.msra.mxu0 0
  %1019 = vmatprep.subr.bf16.mxu0 0
  %1020 = vmatpush1.bf16.msra.mxu0 0
  %1021 = vmatprep.subr.bf16.mxu0 0
  %1022 = vmatpush1.bf16.msra.mxu0 0
  %1023 = vmatprep.subr.bf16.mxu0 0
  %1024 = vmatpush1.bf16.msra.mxu0 0
  %1025 = vmatprep.subr.bf16.mxu0 0
  %1026 = vmatpush1.bf16.msra.mxu0 0
  %1027 = vmatprep.subr.bf16.mxu0 0
  %1028 = vmatpush1.bf16.msra.mxu0 0
  %1029 = vmatprep.subr.bf16.mxu0 0
  %1030 = vmatpush1.bf16.msra.mxu0 0
  %1031 = vmatprep.mubr.bf16.mxu0 0
  %1032 = vmatmul.mubr.bf16.gmra.mrb[0].mxu0 %v931
  %v1033 = vpop.f32.mrb[0].mxu0
  %v1034 = vadd.f32 0.0, %v1033
  %v1035 = vpop.f32.mrb[0].mxu0
  %v1036 = vpop.f32.mrb[0].mxu0
  %v1037 = vadd.f32 0.0, %v1036
  %v1038 = vpop.f32.mrb[0].mxu0
  %1039 = vmatprep.mubr.bf16.mxu0 0
  %1040 = vmatmul.mubr.bf16.gmra.mrb[0].mxu0 %v932
  %v1041 = vpop.f32.mrb[0].mxu0
  %v1042 = vadd.f32 0.0, %v1041
  %v1043 = vpop.f32.mrb[0].mxu0
  %v1044 = vpop.f32.mrb[0].mxu0
  %v1045 = vadd.f32 0.0, %v1044
  %v1046 = vpop.f32.mrb[0].mxu0
  %1047 = vmatprep.mubr.bf16.mxu0 0
  %1048 = vmatmul.mubr.bf16.gmra.mrb[0].mxu0 %v933
  %v1049 = vpop.f32.mrb[0].mxu0
  %v1050 = vadd.f32 0.0, %v1049
  %v1051 = vpop.f32.mrb[0].mxu0
  %v1052 = vpop.f32.mrb[0].mxu0
  %v1053 = vpop.f32.mrb[0].mxu0
  %1054 = vdwg.mxu0
  %v1055 = vadd.f32 %v910, %v1034
  %v1056 = vadd.f32 %v913, %v1037
  %v1057 = vadd.f32 %v918, %v1042
  %v1058 = vadd.f32 %v921, %v1045
  %v1059 = vadd.f32 %v926, %v1050
  %v1060 = vld [vmem:[%s4 + $0x1] sm:$0x1]
  %v1061 = vlaneseq
  %v1062 = vshrl.u32 %v1061, 7
  %v1063 = vsub.s32 0, %v1062
  %v1064 = vrot.slane %v1060, %v1063
  %v1065 = vadd.f32 %v1055, %v1064
  %v1066 = vadd.f32 %v1056, %v1064
  %v1067 = vadd.f32 %v1057, %v1064
  %v1068 = vadd.f32 %v1058, %v1064
  %v1069 = vadd.f32 %v1059, %v1064
  %v1070 = vmul.f32 %v1065, 0.5
  %v1071 = vmul.f32 %v1066, 0.5
  %v1072 = vmul.f32 %v1067, 0.5
  %v1073 = vmul.f32 %v1068, 0.5
  %v1074 = vmul.f32 %v1069, 0.5
  %v1075 = vtanh.pop %v1070
  %v1076 = vtanh.pop %v1071
  %v1077 = vtanh.pop %v1072
  %v1078 = vtanh.pop %v1073
  %v1079 = vtanh.pop %v1074
  %v1080 = vmul.f32 %v1075, 0.5
  %v1081 = vmul.f32 %v1076, 0.5
  %v1082 = vmul.f32 %v1077, 0.5
  %v1083 = vmul.f32 %v1078, 0.5
  %v1084 = vmul.f32 %v1079, 0.5
  %v1085 = vadd.f32 %v1080, 0.5
  %v1086 = vadd.f32 %v1081, 0.5
  %v1087 = vadd.f32 %v1082, 0.5
  %v1088 = vadd.f32 %v1083, 0.5
  %v1089 = vadd.f32 %v1084, 0.5
  %v1090 = vmul.f32 %v1065, %v1085
  %v1091 = vmul.f32 %v1066, %v1086
  %v1092 = vmul.f32 %v1067, %v1087
  %v1093 = vmul.f32 %v1068, %v1088
  %v1094 = vmul.f32 %v1069, %v1089
  %v1095 = vsel %vm215, %v1090, 0.0
  %v1096 = vsel %vm216, %v1091, 0.0
  %v1097 = vsel %vm217, %v1092, 0.0
  %v1098 = vsel %vm218, %v1093, 0.0
  %v1099 = vsel %vm219, %v1094, 0.0
  %v1100 = vadd.f32 %v1095, %v220
  %v1101 = vadd.f32 %v1096, %v221
  %v1102 = vadd.f32 %v1097, %v222
  %v1103 = vadd.f32 %v1098, %v223
  %v1104 = vadd.f32 %v1099, %v224
  %1105 = vst [vmem:[%s5] sm:$0xff] %v1100
  %1106 = vst [vmem:[%s5 + $0x8] sm:$0xff] %v1101
  %1107 = vst [vmem:[%s5 + $0x10] sm:$0xff] %v1102
  %1108 = vst [vmem:[%s5 + $0x18] sm:$0xff] %v1103
  %1109 = vst [vmem:[%s5 + $0x20] sm:$0xff] %v1104
  // Predicated region
  $region22: #{c1_forward.1} parent=0 // pred_check
    _
  $region23: #{c1_forward.1} parent=0 // pred_check_branch
    %1111 = sbr.rel (0) target = $region25
  $region24: #{c1_forward.1} parent=0 // pred_region
    _
  $region25: #{c1_forward.1} parent=0 // pred_fallthru
    _
  // Predicated region
  $region26: #{c1_forward.1} parent=0 // pred_check
    _
  $region27: #{c1_forward.1} parent=0 // pred_check_branch
    %1113 = sbr.rel (0) target = $region29
  $region28: #{c1_forward.1} parent=0 // pred_region
    _
  $region29: #{c1_forward.1} parent=0 // pred_fallthru
    _

</llo_original>
